<compile_context>
chip_gen: v5e
topology: v5e:2x2
jax: 0.10.0
libtpu: 0.0.40
codegen_flags: <defaults>
</compile_context>

<pallas_src>
import functools

import jax
import jax.numpy as jnp
from jax.experimental import pallas as pl
from jax.experimental.pallas import tpu as pltpu

_IN, _H1, _H2, _OUT = 8, 6, 4, 1
_PACK = 128 // _IN            # 16 samples packed per 128-lane row
_MIN_ROWS_PER_STEP = 1024     # only force a 2-step grid if each half has >=16K samples


def _mlp_kernel(x_ref, w1_ref, b1_ref, w2_ref, b2_ref, w3_ref, b3_ref, o_ref):
    """Fused 3-layer MLP on one (tb, 128) tile of 16-sample-packed rows.

    w{i}_ref are block-diagonal kron(I_16, W_i.T) weights in VMEM and b{i}_ref the
    matching 16x-tiled biases, so each layer is one MXU matmul + VPU bias add +
    EUP sigmoid over fully lane-dense tiles.
    """
    h = jnp.dot(x_ref[...], w1_ref[...], preferred_element_type=jnp.float32)
    h = jax.nn.sigmoid(h + b1_ref[...])
    h = jnp.dot(h, w2_ref[...], preferred_element_type=jnp.float32)
    h = jax.nn.sigmoid(h + b2_ref[...])
    h = jnp.dot(h, w3_ref[...], preferred_element_type=jnp.float32)
    o_ref[...] = jax.nn.sigmoid(h + b3_ref[...])


def _round_up(n, m):
    return ((n + m - 1) // m) * m


def _block_diag_params(params):
    """(out, in) weights -> kron(I_16, W.T) matmul operands + 16x-tiled biases."""
    eye = jnp.eye(_PACK, dtype=jnp.float32)
    ws = tuple(jnp.kron(eye, params[f"w{i}"].astype(jnp.float32).T) for i in (1, 2, 3))
    bs = tuple(jnp.tile(params[f"b{i}"].astype(jnp.float32), _PACK)[None, :]
               for i in (1, 2, 3))
    return ws, bs


@functools.partial(jax.jit, static_argnames=("block_rows",))
def mlp_forward(x, params, *, block_rows=8192):
    """x: (B, 8) float32 -> (B, 1) float32 (same semantics as the PyTorch model)."""
    B = x.shape[0]
    x = x.astype(jnp.float32)

    # Pack 16 samples per 128-lane row; tile the row axis for the 1-D grid.
    rows = pl.cdiv(max(B, 1), _PACK)
    n_steps = pl.cdiv(rows, block_rows)
    if n_steps == 1 and rows >= 2 * _MIN_ROWS_PER_STEP:
        n_steps = 2                                   # keep both v7x TensorCores busy
    tb = _round_up(pl.cdiv(rows, n_steps), 8)         # sublane-aligned block rows
    rows_pad = tb * n_steps
    b_pad = rows_pad * _PACK

    if b_pad != B:                                    # static; skipped for aligned B
        x = jnp.pad(x, ((0, b_pad - B), (0, 0)))
    xp = x.reshape(rows_pad, 128)                     # free contiguous reshape

    (w1, w2, w3), (b1, b2, b3) = _block_diag_params(params)

    def full(shape):
        return pl.BlockSpec(shape, lambda i: (0, 0))

    out = pl.pallas_call(
        _mlp_kernel,
        out_shape=jax.ShapeDtypeStruct((rows_pad, _PACK), jnp.float32),
        grid=(n_steps,),
        in_specs=[
            pl.BlockSpec((tb, 128), lambda i: (i, 0)),        # packed x tile
            full((_IN * _PACK, _H1 * _PACK)),                 # w1 block-diag (128, 96)
            full((1, _H1 * _PACK)),                           # b1 tiled      (1, 96)
            full((_H1 * _PACK, _H2 * _PACK)),                 # w2 block-diag (96, 64)
            full((1, _H2 * _PACK)),                           # b2 tiled      (1, 64)
            full((_H2 * _PACK, _OUT * _PACK)),                # w3 block-diag (64, 16)
            full((1, _OUT * _PACK)),                          # b3 tiled      (1, 16)
        ],
        out_specs=pl.BlockSpec((tb, _PACK), lambda i: (i, 0)),
        compiler_params=pltpu.CompilerParams(
            dimension_semantics=("parallel",),
            vmem_limit_bytes=56 * 1024 * 1024),
    )(xp, w1, b1, w2, b2, w3, b3)

    # Free row-major reshape back to (B, 1); padded samples are sliced off.
    return out.reshape(b_pad, 1)[:B]


def init_params(key):
    """PyTorch-Linear-style init: U(-1/sqrt(fan_in), 1/sqrt(fan_in)).

    Weights stored as (out_features, in_features); biases as (out_features,).
    """
    dims = [(_H1, _IN), (_H2, _H1), (_OUT, _H2)]
    params = {}
    for i, (fan_out, fan_in) in enumerate(dims, start=1):
        key, kw, kb = jax.random.split(key, 3)
        bound = 1.0 / (fan_in ** 0.5)
        params[f"w{i}"] = jax.random.uniform(
            kw, (fan_out, fan_in), jnp.float32, -bound, bound)
        params[f"b{i}"] = jax.random.uniform(
            kb, (fan_out,), jnp.float32, -bound, bound)
    return params


def mlp_reference(x, params):
    hp = jax.lax.Precision.HIGHEST
    h = jax.nn.sigmoid(jnp.dot(x, params["w1"].T, precision=hp) + params["b1"])
    h = jax.nn.sigmoid(jnp.dot(h, params["w2"].T, precision=hp) + params["b2"])
    return jax.nn.sigmoid(jnp.dot(h, params["w3"].T, precision=hp) + params["b3"])


if __name__ == "__main__":
    key = jax.random.PRNGKey(0)
    key, kx, kx2 = jax.random.split(key, 3)
    params = init_params(key)

    # Small deterministic check (shapes implied by the PyTorch module).
    B = 8
    x = jax.random.normal(kx, (B, _IN), jnp.float32)
    out = jax.block_until_ready(mlp_forward(x, params))
    ref = mlp_reference(x, params)
    assert out.shape == (B, 1)
    assert jnp.allclose(out, ref, atol=1e-4, rtol=1e-4), float(jnp.max(jnp.abs(out - ref)))

    # Larger check exercising padding + a multi-step "parallel" batch grid.
    B2 = 50_000
    x2 = jax.random.normal(kx2, (B2, _IN), jnp.float32)
    out2 = jax.block_until_ready(mlp_forward(x2, params, block_rows=1024))
    ref2 = mlp_reference(x2, params)
    assert out2.shape == (B2, 1)
    assert jnp.allclose(out2, ref2, atol=1e-4, rtol=1e-4), float(jnp.max(jnp.abs(out2 - ref2)))

    print("KERNEL_OK")
</pallas_src>

<mosaic_0001>
module attributes {stable_mosaic.version = 11 : i64} {
  func.func @_mlp_kernel(%arg0: i32, %arg1: memref<8x128xf32, #tpu.memory_space<vmem>>, %arg2: memref<128x96xf32, #tpu.memory_space<vmem>>, %arg3: memref<1x96xf32, #tpu.memory_space<vmem>>, %arg4: memref<96x64xf32, #tpu.memory_space<vmem>>, %arg5: memref<1x64xf32, #tpu.memory_space<vmem>>, %arg6: memref<64x16xf32, #tpu.memory_space<vmem>>, %arg7: memref<1x16xf32, #tpu.memory_space<vmem>>, %arg8: memref<8x16xf32, #tpu.memory_space<vmem>>) attributes {dimension_semantics = [#tpu.dimension_semantics<parallel>], iteration_bounds = array<i64: 1>, scalar_prefetch = 0 : i64, scratch_operands = 0 : i64, tpu.core_type = #tpu.core_type<tc>, window_params = [{transform_indices = @transform_0, window_bounds = array<i64: 8, 128>}, {pipeline_mode = #tpu.pipeline_mode<synchronous>, transform_indices = @transform_1, window_bounds = array<i64: 128, 96>}, {pipeline_mode = #tpu.pipeline_mode<synchronous>, transform_indices = @transform_2, window_bounds = array<i64: 1, 96>}, {pipeline_mode = #tpu.pipeline_mode<synchronous>, transform_indices = @transform_3, window_bounds = array<i64: 96, 64>}, {pipeline_mode = #tpu.pipeline_mode<synchronous>, transform_indices = @transform_4, window_bounds = array<i64: 1, 64>}, {pipeline_mode = #tpu.pipeline_mode<synchronous>, transform_indices = @transform_5, window_bounds = array<i64: 64, 16>}, {pipeline_mode = #tpu.pipeline_mode<synchronous>, transform_indices = @transform_6, window_bounds = array<i64: 1, 16>}, {transform_indices = @transform_7, window_bounds = array<i64: 8, 16>}]} {
    %c0 = arith.constant 0 : index
    %c0_0 = arith.constant 0 : index
    %0 = vector.load %arg1[%c0, %c0_0] : memref<8x128xf32, #tpu.memory_space<vmem>>, vector<8x128xf32>
    %c0_1 = arith.constant 0 : index
    %c0_2 = arith.constant 0 : index
    %1 = vector.load %arg2[%c0_1, %c0_2] : memref<128x96xf32, #tpu.memory_space<vmem>>, vector<128x96xf32>
    %cst = arith.constant dense<0.000000e+00> : vector<8x96xf32>
    %2 = tpu.matmul %0, %1, %cst {dimension_numbers = #tpu.dot_dimension_numbers<[1], [0], [0], [1], [0, 0, 1, 1], [], []>} : vector<8x128xf32>, vector<128x96xf32>, vector<8x96xf32> -> vector<8x96xf32>
    %c0_3 = arith.constant 0 : index
    %c0_4 = arith.constant 0 : index
    %3 = vector.load %arg3[%c0_3, %c0_4] : memref<1x96xf32, #tpu.memory_space<vmem>>, vector<1x96xf32>
    %4 = vector.broadcast %3 : vector<1x96xf32> to vector<8x96xf32>
    %5 = arith.addf %2, %4 : vector<8x96xf32>
    %6 = arith.negf %5 : vector<8x96xf32>
    %7 = math.exp %6 : vector<8x96xf32>
    %cst_5 = arith.constant 1.000000e+00 : f32
    %8 = vector.broadcast %cst_5 : f32 to vector<8x96xf32>
    %9 = arith.addf %8, %7 : vector<8x96xf32>
    %10 = arith.divf %8, %9 : vector<8x96xf32>
    %c0_6 = arith.constant 0 : index
    %c0_7 = arith.constant 0 : index
    %11 = vector.load %arg4[%c0_6, %c0_7] : memref<96x64xf32, #tpu.memory_space<vmem>>, vector<96x64xf32>
    %cst_8 = arith.constant dense<0.000000e+00> : vector<8x64xf32>
    %12 = tpu.matmul %10, %11, %cst_8 {dimension_numbers = #tpu.dot_dimension_numbers<[1], [0], [0], [1], [0, 0, 1, 1], [], []>} : vector<8x96xf32>, vector<96x64xf32>, vector<8x64xf32> -> vector<8x64xf32>
    %c0_9 = arith.constant 0 : index
    %c0_10 = arith.constant 0 : index
    %13 = vector.load %arg5[%c0_9, %c0_10] : memref<1x64xf32, #tpu.memory_space<vmem>>, vector<1x64xf32>
    %14 = vector.broadcast %13 : vector<1x64xf32> to vector<8x64xf32>
    %15 = arith.addf %12, %14 : vector<8x64xf32>
    %16 = arith.negf %15 : vector<8x64xf32>
    %17 = math.exp %16 : vector<8x64xf32>
    %cst_11 = arith.constant 1.000000e+00 : f32
    %18 = vector.broadcast %cst_11 : f32 to vector<8x64xf32>
    %19 = arith.addf %18, %17 : vector<8x64xf32>
    %20 = arith.divf %18, %19 : vector<8x64xf32>
    %c0_12 = arith.constant 0 : index
    %c0_13 = arith.constant 0 : index
    %21 = vector.load %arg6[%c0_12, %c0_13] : memref<64x16xf32, #tpu.memory_space<vmem>>, vector<64x16xf32>
    %cst_14 = arith.constant dense<0.000000e+00> : vector<8x16xf32>
    %22 = tpu.matmul %20, %21, %cst_14 {dimension_numbers = #tpu.dot_dimension_numbers<[1], [0], [0], [1], [0, 0, 1, 1], [], []>} : vector<8x64xf32>, vector<64x16xf32>, vector<8x16xf32> -> vector<8x16xf32>
    %c0_15 = arith.constant 0 : index
    %c0_16 = arith.constant 0 : index
    %23 = vector.load %arg7[%c0_15, %c0_16] : memref<1x16xf32, #tpu.memory_space<vmem>>, vector<1x16xf32>
    %24 = vector.broadcast %23 : vector<1x16xf32> to vector<8x16xf32>
    %25 = arith.addf %22, %24 : vector<8x16xf32>
    %26 = arith.negf %25 : vector<8x16xf32>
    %27 = math.exp %26 : vector<8x16xf32>
    %cst_17 = arith.constant 1.000000e+00 : f32
    %28 = vector.broadcast %cst_17 : f32 to vector<8x16xf32>
    %29 = arith.addf %28, %27 : vector<8x16xf32>
    %30 = arith.divf %28, %29 : vector<8x16xf32>
    %c0_18 = arith.constant 0 : index
    %c0_19 = arith.constant 0 : index
    %31 = vector.load %arg8[%c0_18, %c0_19] : memref<8x16xf32, #tpu.memory_space<vmem>>, vector<8x16xf32>
    tpu.vector_store %arg8[%c0_18, %c0_19], %30 {strides = array<i32>} : memref<8x16xf32, #tpu.memory_space<vmem>>, vector<8x16xf32>,
    return
  }
  func.func @transform_0(%arg0: i32) -> (i32, i32) {
    %c0_i32 = arith.constant 0 : i32
    %c0_i32_0 = arith.constant 0 : i32
    return %arg0, %c0_i32 : i32, i32
  }
  func.func @transform_1(%arg0: i32) -> (i32, i32) {
    %c0_i32 = arith.constant 0 : i32
    %c0_i32_0 = arith.constant 0 : i32
    %c0_i32_1 = arith.constant 0 : i32
    return %c0_i32, %c0_i32_0 : i32, i32
  }
  func.func @transform_2(%arg0: i32) -> (i32, i32) {
    %c0_i32 = arith.constant 0 : i32
    %c0_i32_0 = arith.constant 0 : i32
    %c0_i32_1 = arith.constant 0 : i32
    return %c0_i32, %c0_i32_0 : i32, i32
  }
  func.func @transform_3(%arg0: i32) -> (i32, i32) {
    %c0_i32 = arith.constant 0 : i32
    %c0_i32_0 = arith.constant 0 : i32
    %c0_i32_1 = arith.constant 0 : i32
    return %c0_i32, %c0_i32_0 : i32, i32
  }
  func.func @transform_4(%arg0: i32) -> (i32, i32) {
    %c0_i32 = arith.constant 0 : i32
    %c0_i32_0 = arith.constant 0 : i32
    %c0_i32_1 = arith.constant 0 : i32
    return %c0_i32, %c0_i32_0 : i32, i32
  }
  func.func @transform_5(%arg0: i32) -> (i32, i32) {
    %c0_i32 = arith.constant 0 : i32
    %c0_i32_0 = arith.constant 0 : i32
    %c0_i32_1 = arith.constant 0 : i32
    return %c0_i32, %c0_i32_0 : i32, i32
  }
  func.func @transform_6(%arg0: i32) -> (i32, i32) {
    %c0_i32 = arith.constant 0 : i32
    %c0_i32_0 = arith.constant 0 : i32
    %c0_i32_1 = arith.constant 0 : i32
    return %c0_i32, %c0_i32_0 : i32, i32
  }
  func.func @transform_7(%arg0: i32) -> (i32, i32) {
    %c0_i32 = arith.constant 0 : i32
    %c0_i32_0 = arith.constant 0 : i32
    return %arg0, %c0_i32 : i32, i32
  }
}

</mosaic_0001>

<llo_original>
// kernel: tile.18
$region0: #{tile.18}
  #allocation0 [shape = 's32[1]{0}', space=sflag, size = 0x4, scoped, tag = 'scoped memory for tile.18']
  %s0 = inlined_call_operand.vmem [shape: f32[6], index: 0, kind: input, shape index: {}]
  %s1 = inlined_call_operand.vmem [shape: f32[16,6], index: 1, kind: output, shape index: {}]
  // Predicated region
  $region2: #{tile.18} parent=0 // pred_check
    _
  $region3: #{tile.18} parent=0 // pred_check_branch
    %3 = sbr.rel (0) target = $region5
  $region4: #{tile.18} parent=0 // pred_region
    _
  $region5: #{tile.18} parent=0 // pred_fallthru
    _
  %v4 = vld [vmem:[%s0] ss:$0 sm:$0xff]
  %5 = vst [vmem:[%s1] sm:$0xff] %v4
  %s6 = scalar_lea.vmem %s1, 8
  %7 = vst [vmem:[%s6] sm:$0xff] %v4

// kernel: tile.19
$region0: #{tile.19}
  %s0 = inlined_call_operand.vmem [shape: f32[16,6], index: 0, kind: input, shape index: {}]
  %s1 = inlined_call_operand.vmem [shape: f32[1,96], index: 1, kind: output, shape index: {}]
  $region1: #{tile.19} parent=0
    #allocation0 [shape = 'u8[4096]{0}', space=vmem, size = 0x1000, scoped, tag = 'scoped mem for output reshape']
    %v2 = vld [vmem:[%s0] sm:$0x1]
    %vm3 = vcmask 48128
    %4 = vst.msk [vmem:[#allocation0] sm:$0x1] %vm3, %v2
    %s5 = scalar_lea.vmem %s0, 15
    %v6 = vld [vmem:[%s5] sm:$0x1]
    %7 = vrot.lane.b32.xlu0 %v6, 90
    %v8 = vpop.permute.xlu0 %7
    %vm9 = vcmask 786128
    %10 = vst.msk [vmem:[#allocation0] sm:$0x1] %vm9, %v8
    %s11 = scalar_lea.vmem %s0, 14
    %v12 = vld [vmem:[%s11] sm:$0x1]
    %13 = vrot.lane.b32.xlu0 %v12, 84
    %v14 = vpop.permute.xlu0 %13
    %vm15 = vcmask 736928
    %16 = vst.msk [vmem:[#allocation0] sm:$0x1] %vm15, %v14
    %s17 = scalar_lea.vmem %s0, 13
    %v18 = vld [vmem:[%s17] sm:$0x1]
    %19 = vrot.lane.b32.xlu0 %v18, 78
    %v20 = vpop.permute.xlu0 %19
    %vm21 = vcmask 687728
    %22 = vst.msk [vmem:[#allocation0] sm:$0x1] %vm21, %v20
    %s23 = scalar_lea.vmem %s0, 12
    %v24 = vld [vmem:[%s23] sm:$0x1]
    %25 = vrot.lane.b32.xlu0 %v24, 72
    %v26 = vpop.permute.xlu0 %25
    %vm27 = vcmask 638528
    %28 = vst.msk [vmem:[#allocation0] sm:$0x1] %vm27, %v26
    %s29 = scalar_lea.vmem %s0, 11
    %v30 = vld [vmem:[%s29] sm:$0x1]
    %31 = vrot.lane.b32.xlu0 %v30, 66
    %v32 = vpop.permute.xlu0 %31
    %vm33 = vcmask 589328
    %34 = vst.msk [vmem:[#allocation0] sm:$0x1] %vm33, %v32
    %s35 = scalar_lea.vmem %s0, 10
    %v36 = vld [vmem:[%s35] sm:$0x1]
    %37 = vrot.lane.b32.xlu0 %v36, 60
    %v38 = vpop.permute.xlu0 %37
    %vm39 = vcmask 540128
    %40 = vst.msk [vmem:[#allocation0] sm:$0x1] %vm39, %v38
    %s41 = scalar_lea.vmem %s0, 9
    %v42 = vld [vmem:[%s41] sm:$0x1]
    %43 = vrot.lane.b32.xlu0 %v42, 54
    %v44 = vpop.permute.xlu0 %43
    %vm45 = vcmask 490928
    %46 = vst.msk [vmem:[#allocation0] sm:$0x1] %vm45, %v44
    %s47 = scalar_lea.vmem %s0, 8
    %v48 = vld [vmem:[%s47] sm:$0x1]
    %49 = vrot.lane.b32.xlu0 %v48, 48
    %v50 = vpop.permute.xlu0 %49
    %vm51 = vcmask 441728
    %52 = vst.msk [vmem:[#allocation0] sm:$0x1] %vm51, %v50
    %s53 = scalar_lea.vmem %s0, 7
    %v54 = vld [vmem:[%s53] sm:$0x1]
    %55 = vrot.lane.b32.xlu0 %v54, 42
    %v56 = vpop.permute.xlu0 %55
    %vm57 = vcmask 392528
    %58 = vst.msk [vmem:[#allocation0] sm:$0x1] %vm57, %v56
    %s59 = scalar_lea.vmem %s0, 6
    %v60 = vld [vmem:[%s59] sm:$0x1]
    %61 = vrot.lane.b32.xlu0 %v60, 36
    %v62 = vpop.permute.xlu0 %61
    %vm63 = vcmask 343328
    %64 = vst.msk [vmem:[#allocation0] sm:$0x1] %vm63, %v62
    %s65 = scalar_lea.vmem %s0, 5
    %v66 = vld [vmem:[%s65] sm:$0x1]
    %67 = vrot.lane.b32.xlu0 %v66, 30
    %v68 = vpop.permute.xlu0 %67
    %vm69 = vcmask 294128
    %70 = vst.msk [vmem:[#allocation0] sm:$0x1] %vm69, %v68
    %s71 = scalar_lea.vmem %s0, 4
    %v72 = vld [vmem:[%s71] sm:$0x1]
    %73 = vrot.lane.b32.xlu0 %v72, 24
    %v74 = vpop.permute.xlu0 %73
    %vm75 = vcmask 244928
    %76 = vst.msk [vmem:[#allocation0] sm:$0x1] %vm75, %v74
    %s77 = scalar_lea.vmem %s0, 3
    %v78 = vld [vmem:[%s77] sm:$0x1]
    %79 = vrot.lane.b32.xlu0 %v78, 18
    %v80 = vpop.permute.xlu0 %79
    %vm81 = vcmask 195728
    %82 = vst.msk [vmem:[#allocation0] sm:$0x1] %vm81, %v80
    %s83 = scalar_lea.vmem %s0, 2
    %v84 = vld [vmem:[%s83] sm:$0x1]
    %85 = vrot.lane.b32.xlu0 %v84, 12
    %v86 = vpop.permute.xlu0 %85
    %vm87 = vcmask 146528
    %88 = vst.msk [vmem:[#allocation0] sm:$0x1] %vm87, %v86
    %s89 = scalar_lea.vmem %s0, 1
    %v90 = vld [vmem:[%s89] sm:$0x1]
    %91 = vrot.lane.b32.xlu0 %v90, 6
    %v92 = vpop.permute.xlu0 %91
    %vm93 = vcmask 97328
    %94 = vst.msk [vmem:[#allocation0] sm:$0x1] %vm93, %v92
    %s96 = ssub.s32 2, 1
    %v97 = vld [vmem:[#allocation0] sm:%s96]
    %s99 = ssub.s32 2, 1
    %100 = vst [vmem:[%s1] sm:%s99] %v97

// kernel: tile.24
$region0: #{tile.24}
  %s0 = inlined_call_operand.vmem [shape: f32[16,4], index: 0, kind: input, shape index: {}]
  %s1 = inlined_call_operand.vmem [shape: f32[1,64], index: 1, kind: output, shape index: {}]
  $region1: #{tile.24} parent=0
    #allocation0 [shape = 'u8[4096]{0}', space=vmem, size = 0x1000, scoped, tag = 'scoped mem for output reshape']
    %v2 = vld [vmem:[%s0] sm:$0x1]
    %vm3 = vcmask 31744
    %4 = vst.msk [vmem:[#allocation0] sm:$0x1] %vm3, %v2
    %s5 = scalar_lea.vmem %s0, 15
    %v6 = vld [vmem:[%s5] sm:$0x1]
    %7 = vrot.lane.b32.xlu0 %v6, 60
    %v8 = vpop.permute.xlu0 %7
    %vm9 = vcmask 523744
    %10 = vst.msk [vmem:[#allocation0] sm:$0x1] %vm9, %v8
    %s11 = scalar_lea.vmem %s0, 14
    %v12 = vld [vmem:[%s11] sm:$0x1]
    %13 = vrot.lane.b32.xlu0 %v12, 56
    %v14 = vpop.permute.xlu0 %13
    %vm15 = vcmask 490944
    %16 = vst.msk [vmem:[#allocation0] sm:$0x1] %vm15, %v14
    %s17 = scalar_lea.vmem %s0, 13
    %v18 = vld [vmem:[%s17] sm:$0x1]
    %19 = vrot.lane.b32.xlu0 %v18, 52
    %v20 = vpop.permute.xlu0 %19
    %vm21 = vcmask 458144
    %22 = vst.msk [vmem:[#allocation0] sm:$0x1] %vm21, %v20
    %s23 = scalar_lea.vmem %s0, 12
    %v24 = vld [vmem:[%s23] sm:$0x1]
    %25 = vrot.lane.b32.xlu0 %v24, 48
    %v26 = vpop.permute.xlu0 %25
    %vm27 = vcmask 425344
    %28 = vst.msk [vmem:[#allocation0] sm:$0x1] %vm27, %v26
    %s29 = scalar_lea.vmem %s0, 11
    %v30 = vld [vmem:[%s29] sm:$0x1]
    %31 = vrot.lane.b32.xlu0 %v30, 44
    %v32 = vpop.permute.xlu0 %31
    %vm33 = vcmask 392544
    %34 = vst.msk [vmem:[#allocation0] sm:$0x1] %vm33, %v32
    %s35 = scalar_lea.vmem %s0, 10
    %v36 = vld [vmem:[%s35] sm:$0x1]
    %37 = vrot.lane.b32.xlu0 %v36, 40
    %v38 = vpop.permute.xlu0 %37
    %vm39 = vcmask 359744
    %40 = vst.msk [vmem:[#allocation0] sm:$0x1] %vm39, %v38
    %s41 = scalar_lea.vmem %s0, 9
    %v42 = vld [vmem:[%s41] sm:$0x1]
    %43 = vrot.lane.b32.xlu0 %v42, 36
    %v44 = vpop.permute.xlu0 %43
    %vm45 = vcmask 326944
    %46 = vst.msk [vmem:[#allocation0] sm:$0x1] %vm45, %v44
    %s47 = scalar_lea.vmem %s0, 8
    %v48 = vld [vmem:[%s47] sm:$0x1]
    %49 = vrot.lane.b32.xlu0 %v48, 32
    %v50 = vpop.permute.xlu0 %49
    %vm51 = vcmask 294144
    %52 = vst.msk [vmem:[#allocation0] sm:$0x1] %vm51, %v50
    %s53 = scalar_lea.vmem %s0, 7
    %v54 = vld [vmem:[%s53] sm:$0x1]
    %55 = vrot.lane.b32.xlu0 %v54, 28
    %v56 = vpop.permute.xlu0 %55
    %vm57 = vcmask 261344
    %58 = vst.msk [vmem:[#allocation0] sm:$0x1] %vm57, %v56
    %s59 = scalar_lea.vmem %s0, 6
    %v60 = vld [vmem:[%s59] sm:$0x1]
    %61 = vrot.lane.b32.xlu0 %v60, 24
    %v62 = vpop.permute.xlu0 %61
    %vm63 = vcmask 228544
    %64 = vst.msk [vmem:[#allocation0] sm:$0x1] %vm63, %v62
    %s65 = scalar_lea.vmem %s0, 5
    %v66 = vld [vmem:[%s65] sm:$0x1]
    %67 = vrot.lane.b32.xlu0 %v66, 20
    %v68 = vpop.permute.xlu0 %67
    %vm69 = vcmask 195744
    %70 = vst.msk [vmem:[#allocation0] sm:$0x1] %vm69, %v68
    %s71 = scalar_lea.vmem %s0, 4
    %v72 = vld [vmem:[%s71] sm:$0x1]
    %73 = vrot.lane.b32.xlu0 %v72, 16
    %v74 = vpop.permute.xlu0 %73
    %vm75 = vcmask 162944
    %76 = vst.msk [vmem:[#allocation0] sm:$0x1] %vm75, %v74
    %s77 = scalar_lea.vmem %s0, 3
    %v78 = vld [vmem:[%s77] sm:$0x1]
    %79 = vrot.lane.b32.xlu0 %v78, 12
    %v80 = vpop.permute.xlu0 %79
    %vm81 = vcmask 130144
    %82 = vst.msk [vmem:[#allocation0] sm:$0x1] %vm81, %v80
    %s83 = scalar_lea.vmem %s0, 2
    %v84 = vld [vmem:[%s83] sm:$0x1]
    %85 = vrot.lane.b32.xlu0 %v84, 8
    %v86 = vpop.permute.xlu0 %85
    %vm87 = vcmask 97344
    %88 = vst.msk [vmem:[#allocation0] sm:$0x1] %vm87, %v86
    %s89 = scalar_lea.vmem %s0, 1
    %v90 = vld [vmem:[%s89] sm:$0x1]
    %91 = vrot.lane.b32.xlu0 %v90, 4
    %v92 = vpop.permute.xlu0 %91
    %vm93 = vcmask 64544
    %94 = vst.msk [vmem:[#allocation0] sm:$0x1] %vm93, %v92
    %s96 = ssub.s32 2, 1
    %v97 = vld [vmem:[#allocation0] sm:%s96]
    %s99 = ssub.s32 2, 1
    %100 = vst [vmem:[%s1] sm:%s99] %v97

// kernel: mlp_forward.1
$region0: #{mlp_forward.1}
  #allocation0 [shape = 'u32[]', space=smem, size = 0x4, offset = 0x4, fixed_abs, tag = 'smem constant byte address 0x4 - core index']
  #allocation1 [shape = 'u32[72,128]{1,0:T(1,128)}', space=vmem, size = 0x9000, scoped, tag = 'internal scratch']
  %s0 = inlined_call_operand.vmem [shape: f32[8,128], index: 0, kind: input, shape index: {}]
  %s1 = inlined_call_operand.vmem [shape: f32[128,96], index: 1, kind: input, shape index: {}]
  %s2 = inlined_call_operand.vmem [shape: f32[1,96], index: 2, kind: input, shape index: {}]
  %s3 = inlined_call_operand.vmem [shape: f32[96,64], index: 3, kind: input, shape index: {}]
  %s4 = inlined_call_operand.vmem [shape: f32[1,64], index: 4, kind: input, shape index: {}]
  %s5 = inlined_call_operand.vmem [shape: f32[64,16], index: 5, kind: input, shape index: {}]
  %s6 = inlined_call_operand.vmem [shape: f32[1,16], index: 6, kind: input, shape index: {}]
  %s7 = inlined_call_operand.vmem [shape: f32[8,16], index: 7, kind: output, shape index: {}]
  %s8 = sld [smem:[#allocation0]]
  $region38: #{mlp_forward.1} parent=0
    _
  %s10 = ssub.s32 1, %s8
  %s11 = scalar_select 0, %s10, %s8
  // Predicated region
  $region2: #{mlp_forward.1} parent=0 // pred_check
    _
  $region3: #{mlp_forward.1} parent=0 // pred_check_branch
    %13 = sbr.rel (0) target = $region5
  $region4: #{mlp_forward.1} parent=0 // pred_region
    _
  $region5: #{mlp_forward.1} parent=0 // pred_fallthru
    _
  // Predicated region
  $region6: #{mlp_forward.1} parent=0 // pred_check
    _
  $region7: #{mlp_forward.1} parent=0 // pred_check_branch
    %15 = sbr.rel (0) target = $region9
  $region8: #{mlp_forward.1} parent=0 // pred_region
    _
  $region9: #{mlp_forward.1} parent=0 // pred_fallthru
    _
  // Predicated region
  $region10: #{mlp_forward.1} parent=0 // pred_check
    _
  $region11: #{mlp_forward.1} parent=0 // pred_check_branch
    %17 = sbr.rel (0) target = $region13
  $region12: #{mlp_forward.1} parent=0 // pred_region
    _
  $region13: #{mlp_forward.1} parent=0 // pred_fallthru
    _
  // Predicated region
  $region14: #{mlp_forward.1} parent=0 // pred_check
    _
  $region15: #{mlp_forward.1} parent=0 // pred_check_branch
    %19 = sbr.rel (0) target = $region17
  $region16: #{mlp_forward.1} parent=0 // pred_region
    _
  $region17: #{mlp_forward.1} parent=0 // pred_fallthru
    _
  // Predicated region
  $region18: #{mlp_forward.1} parent=0 // pred_check
    _
  $region19: #{mlp_forward.1} parent=0 // pred_check_branch
    %21 = sbr.rel (0) target = $region21
  $region20: #{mlp_forward.1} parent=0 // pred_region
    _
  $region21: #{mlp_forward.1} parent=0 // pred_fallthru
    _
  // Predicated region
  $region22: #{mlp_forward.1} parent=0 // pred_check
    _
  $region23: #{mlp_forward.1} parent=0 // pred_check_branch
    %23 = sbr.rel (0) target = $region25
  $region24: #{mlp_forward.1} parent=0 // pred_region
    _
  $region25: #{mlp_forward.1} parent=0 // pred_fallthru
    _
  // Predicated region
  $region26: #{mlp_forward.1} parent=0 // pred_check
    _
  $region27: #{mlp_forward.1} parent=0 // pred_check_branch
    %25 = sbr.rel (0) target = $region29
  $region28: #{mlp_forward.1} parent=0 // pred_region
    _
  $region29: #{mlp_forward.1} parent=0 // pred_fallthru
    _
  %v26 = vld [vmem:[%s0] sm:$0xff]
  %v27 = vld [vmem:[%s1] sm:$0xff]
  %v28 = vld [vmem:[%s1 + $0x8] sm:$0xff]
  %v29 = vld [vmem:[%s1 + $0x10] sm:$0xff]
  %v30 = vld [vmem:[%s1 + $0x18] sm:$0xff]
  %v31 = vld [vmem:[%s1 + $0x20] sm:$0xff]
  %v32 = vld [vmem:[%s1 + $0x28] sm:$0xff]
  %v33 = vld [vmem:[%s1 + $0x30] sm:$0xff]
  %v34 = vld [vmem:[%s1 + $0x38] sm:$0xff]
  %v35 = vld [vmem:[%s1 + $0x40] sm:$0xff]
  %v36 = vld [vmem:[%s1 + $0x48] sm:$0xff]
  %v37 = vld [vmem:[%s1 + $0x50] sm:$0xff]
  %v38 = vld [vmem:[%s1 + $0x58] sm:$0xff]
  %v39 = vld [vmem:[%s1 + $0x60] sm:$0xff]
  %v40 = vld [vmem:[%s1 + $0x68] sm:$0xff]
  %v41 = vld [vmem:[%s1 + $0x70] sm:$0xff]
  %v42 = vld [vmem:[%s1 + $0x78] sm:$0xff]
  %v43 = vld [vmem:[%s2] sm:$0x1]
  %v45 = vperm.slane %v43, 0
  %47 = vmatpush.msra.mxu0 %v42
  %48 = vmatpush.msra.mxu0 %v41
  %49 = vmatpush.msra.mxu0 %v40
  %50 = vmatpush.msra.mxu0 %v39
  %51 = vmatpush.msra.mxu0 %v38
  %52 = vmatpush.msra.mxu0 %v37
  %53 = vmatpush.msra.mxu0 %v36
  %54 = vmatpush.msra.mxu0 %v35
  %55 = vmatpush.msra.mxu0 %v34
  %56 = vmatpush.msra.mxu0 %v33
  %57 = vmatpush.msra.mxu0 %v32
  %58 = vmatpush.msra.mxu0 %v31
  %59 = vmatpush.msra.mxu0 %v30
  %60 = vmatpush.msra.mxu0 %v29
  %61 = vmatpush.msra.mxu0 %v28
  %62 = vmatpush.msra.mxu0 %v27
  %63 = vmatmul.f32.gmra.mxu0 %v26
  %v64 = vpop.f32.mrf.mxu0
  %v65 = vadd.f32 %v45, %v64
  %66 = vdwg.mxu0
  %v67 = vxor.u32 %v65, 2147483648
  %v68 = vmul.f32 %v67, 1.442695
  %v69 = vpow.pop %v68
  %v70 = vadd.f32 %v69, 1.0
  %v71 = vrcp.pop %v70
  %v72 = vmul.f32 %v70, %v71
  %v73 = vsub.f32 1.0, %v72
  %v74 = vmul.f32 %v71, %v73
  %v75 = vadd.f32 %v71, %v74
  %vm76 = vweird.f32 %v70
  %vm77 = vweird.f32 %v71
  %vm78 = vmor %vm76, %vm77
  %v79 = vsel %vm78, %v71, %v75
  %v80 = vand.u32 2147483647, %v70
  %vm81 = vcmp.eq.f32.partialorder %v80, 8.507059e+37
  %v82 = vand.u32 %v70, 2147483648
  %v83 = vor.u32 1.1754944e-38, %v82
  %v84 = vsel %vm81, %v83, %v79
  %v85 = vmul.f32 1.0, %v84
  %v86 = vld [vmem:[%s3] sm:$0xff]
  %v87 = vld [vmem:[%s3 + $0x8] sm:$0xff]
  %v88 = vld [vmem:[%s3 + $0x10] sm:$0xff]
  %v89 = vld [vmem:[%s3 + $0x18] sm:$0xff]
  %v90 = vld [vmem:[%s3 + $0x20] sm:$0xff]
  %v91 = vld [vmem:[%s3 + $0x28] sm:$0xff]
  %v92 = vld [vmem:[%s3 + $0x30] sm:$0xff]
  %v93 = vld [vmem:[%s3 + $0x38] sm:$0xff]
  %v94 = vld [vmem:[%s3 + $0x40] sm:$0xff]
  %v95 = vld [vmem:[%s3 + $0x48] sm:$0xff]
  %v96 = vld [vmem:[%s3 + $0x50] sm:$0xff]
  %v97 = vld [vmem:[%s3 + $0x58] sm:$0xff]
  %v98 = vld [vmem:[%s4] sm:$0x1]
  %v100 = vperm.slane %v98, 0
  %vm102 = vcmask 785408
  %v104 = vsel %vm102, %v85, 0
  %106 = vmatpush.msra.mxu0 0.0
  %107 = vmatpush.msra.mxu0 0.0
  %108 = vmatpush.msra.mxu0 0.0
  %109 = vmatpush.msra.mxu0 0.0
  %110 = vmatpush.msra.mxu0 %v97
  %111 = vmatpush.msra.mxu0 %v96
  %112 = vmatpush.msra.mxu0 %v95
  %113 = vmatpush.msra.mxu0 %v94
  %114 = vmatpush.msra.mxu0 %v93
  %115 = vmatpush.msra.mxu0 %v92
  %116 = vmatpush.msra.mxu0 %v91
  %117 = vmatpush.msra.mxu0 %v90
  %118 = vmatpush.msra.mxu0 %v89
  %119 = vmatpush.msra.mxu0 %v88
  %120 = vmatpush.msra.mxu0 %v87
  %121 = vmatpush.msra.mxu0 %v86
  %122 = vmatmul.f32.gmra.mxu0 %v104
  %v123 = vpop.f32.mrf.mxu0
  %v124 = vadd.f32 %v100, %v123
  %125 = vdwg.mxu0
  %v126 = vxor.u32 %v124, 2147483648
  %v127 = vmul.f32 %v126, 1.442695
  %v128 = vpow.pop %v127
  %v129 = vadd.f32 %v128, 1.0
  %v130 = vrcp.pop %v129
  %v131 = vmul.f32 %v129, %v130
  %v132 = vsub.f32 1.0, %v131
  %v133 = vmul.f32 %v130, %v132
  %v134 = vadd.f32 %v130, %v133
  %vm135 = vweird.f32 %v129
  %vm136 = vweird.f32 %v130
  %vm137 = vmor %vm135, %vm136
  %v138 = vsel %vm137, %v130, %v134
  %v139 = vand.u32 2147483647, %v129
  %vm140 = vcmp.eq.f32.partialorder %v139, 8.507059e+37
  %v141 = vand.u32 %v129, 2147483648
  %v142 = vor.u32 1.1754944e-38, %v141
  %v143 = vsel %vm140, %v142, %v138
  %v144 = vmul.f32 1.0, %v143
  %v145 = vld [vmem:[%s5] sm:$0xff]
  %v146 = vld [vmem:[%s5 + $0x8] sm:$0xff]
  %v147 = vld [vmem:[%s5 + $0x10] sm:$0xff]
  %v148 = vld [vmem:[%s5 + $0x18] sm:$0xff]
  %v149 = vld [vmem:[%s5 + $0x20] sm:$0xff]
  %v150 = vld [vmem:[%s5 + $0x28] sm:$0xff]
  %v151 = vld [vmem:[%s5 + $0x30] sm:$0xff]
  %v152 = vld [vmem:[%s5 + $0x38] sm:$0xff]
  %v153 = vld [vmem:[%s6] sm:$0x1]
  %v155 = vperm.slane %v153, 0
  %vm157 = vcmask 523264
  %v159 = vsel %vm157, %v144, 0
  %161 = vmatpush.msra.mxu0 0.0
  %162 = vmatpush.msra.mxu0 0.0
  %163 = vmatpush.msra.mxu0 0.0
  %164 = vmatpush.msra.mxu0 0.0
  %165 = vmatpush.msra.mxu0 0.0
  %166 = vmatpush.msra.mxu0 0.0
  %167 = vmatpush.msra.mxu0 0.0
  %168 = vmatpush.msra.mxu0 0.0
  %169 = vmatpush.msra.mxu0 %v152
  %170 = vmatpush.msra.mxu0 %v151
  %171 = vmatpush.msra.mxu0 %v150
  %172 = vmatpush.msra.mxu0 %v149
  %173 = vmatpush.msra.mxu0 %v148
  %174 = vmatpush.msra.mxu0 %v147
  %175 = vmatpush.msra.mxu0 %v146
  %176 = vmatpush.msra.mxu0 %v145
  %177 = vmatmul.f32.gmra.mxu0 %v159
  %v178 = vpop.f32.mrf.mxu0
  %v179 = vadd.f32 %v155, %v178
  %180 = vdwg.mxu0
  %v181 = vxor.u32 %v179, 2147483648
  %v182 = vmul.f32 %v181, 1.442695
  %v183 = vpow.pop %v182
  %v184 = vadd.f32 %v183, 1.0
  %v185 = vrcp.pop %v184
  %v186 = vmul.f32 %v184, %v185
  %v187 = vsub.f32 1.0, %v186
  %v188 = vmul.f32 %v185, %v187
  %v189 = vadd.f32 %v185, %v188
  %vm190 = vweird.f32 %v184
  %vm191 = vweird.f32 %v185
  %vm192 = vmor %vm190, %vm191
  %v193 = vsel %vm192, %v185, %v189
  %v194 = vand.u32 2147483647, %v184
  %vm195 = vcmp.eq.f32.partialorder %v194, 8.507059e+37
  %v196 = vand.u32 %v184, 2147483648
  %v197 = vor.u32 1.1754944e-38, %v196
  %v198 = vsel %vm195, %v197, %v193
  %v199 = vmul.f32 1.0, %v198
  %vm200 = vcmask 130048
  %201 = vst.msk [vmem:[%s7] sm:$0xff] %vm200, %v199
  // Predicated region
  $region30: #{mlp_forward.1} parent=0 // pred_check
    _
  $region31: #{mlp_forward.1} parent=0 // pred_check_branch
    %203 = sbr.rel (0) target = $region33
  $region32: #{mlp_forward.1} parent=0 // pred_region
    _
  $region33: #{mlp_forward.1} parent=0 // pred_fallthru
    _
  // Predicated region
  $region34: #{mlp_forward.1} parent=0 // pred_check
    _
  $region35: #{mlp_forward.1} parent=0 // pred_check_branch
    %205 = sbr.rel (0) target = $region37
  $region36: #{mlp_forward.1} parent=0 // pred_region
    _
  $region37: #{mlp_forward.1} parent=0 // pred_fallthru
    _

</llo_original>
